<compile_context>
chip_gen: v6e
topology: v6e:2x2x1
jax: 0.10.0
libtpu: 0.0.40
codegen_flags: <defaults>
</compile_context>

<pallas_src>
import functools

import jax
import jax.numpy as jnp
from jax import lax
from jax.experimental import pallas as pl
from jax.experimental.pallas import tpu as pltpu


EPS = 1e-5


def _round_up(x, m):
    return (x + m - 1) // m * m


def _sublane_granule(dtype):
    # f32 -> 8, bf16 -> 16, int8/fp8 -> 32 rows per packed sublane group.
    return max(8, 32 // jnp.dtype(dtype).itemsize)


def _vmem_budget_and_limit():
    """Generation-aware VMEM sizing.

    Returns (footprint_budget_bytes, vmem_limit_bytes): ~3/4 of physical
    per-core VMEM as the honest per-step footprint budget (96 MiB on
    v5e/v6e's 128 MiB, 48 MiB on v7x's 64 MiB per-TC) and a compiler scoped
    limit slightly above it.
    """
    try:
        cap = int(pltpu.get_tpu_info().vmem_capacity_bytes)
    except Exception:
        cap = 64 * 1024 * 1024  # conservative fallback (v7x per-TC size)
    cap = max(16 << 20, min(cap, 128 << 20))
    budget = (cap * 3) // 4
    limit = min(cap - (4 << 20), budget + (16 << 20))
    return budget, int(limit)


# ---------------------------------------------------------------------------
# Fused single-pass kernel: full batch resident per channel tile.
# ---------------------------------------------------------------------------
def _bn_fused_kernel(eps, x_ref, gamma_ref, beta_ref, o_ref):
    x = x_ref[...].astype(jnp.float32)                          # (N, TC)
    mean = jnp.mean(x, axis=0, keepdims=True)                   # (1, TC)
    centered = x - mean
    var = jnp.mean(centered * centered, axis=0, keepdims=True)  # biased
    inv_std = lax.rsqrt(var + eps)                              # EUP
    scale = gamma_ref[...] * inv_std                            # (1, TC)
    shift = beta_ref[...] - mean * scale                        # (1, TC)
    o_ref[...] = (x * scale + shift).astype(o_ref.dtype)        # 2 VPU ops/elt


# ---------------------------------------------------------------------------
# Two-pass path for large batches.
# Stats kernel: N is a reduction grid axis; ragged tail rows are masked with
# iota vs the true N; channel-wise mean/M2 are combined with parallel Welford.
# ---------------------------------------------------------------------------
def _bn_stats_kernel(n_true, n_tile, eps, x_ref, gamma_ref, beta_ref,
                     scale_ref, shift_ref, mean_ref, m2_ref):
    i_n = pl.program_id(1)

    @pl.when(i_n == 0)
    def _():
        mean_ref[...] = jnp.zeros_like(mean_ref)
        m2_ref[...] = jnp.zeros_like(m2_ref)

    x = x_ref[...].astype(jnp.float32)                          # (NT, TC)
    nt, tc = x.shape

    row0 = i_n * n_tile
    row_idx = lax.broadcasted_iota(jnp.int32, (nt, tc), 0)
    valid = (row0 + row_idx) < n_true                           # ragged-N mask

    cnt_prev = row0.astype(jnp.float32)
    cnt_tile = jnp.minimum(jnp.int32(n_true) - row0,
                           jnp.int32(n_tile)).astype(jnp.float32)
    cnt_new = cnt_prev + cnt_tile

    xm = jnp.where(valid, x, 0.0)
    tile_mean = jnp.sum(xm, axis=0, keepdims=True) / cnt_tile   # (1, TC)
    d = jnp.where(valid, x - tile_mean, 0.0)
    tile_m2 = jnp.sum(d * d, axis=0, keepdims=True)             # (1, TC)

    delta = tile_mean - mean_ref[...]
    mean_ref[...] = mean_ref[...] + delta * (cnt_tile / cnt_new)
    m2_ref[...] = (m2_ref[...] + tile_m2
                   + (delta * delta) * (cnt_prev * cnt_tile / cnt_new))

    @pl.when(i_n == pl.num_programs(1) - 1)
    def _():
        var = m2_ref[...] * jnp.float32(1.0 / n_true)
        inv_std = lax.rsqrt(var + eps)
        scale = gamma_ref[...] * inv_std
        scale_ref[...] = scale
        shift_ref[...] = beta_ref[...] - mean_ref[...] * scale


def _bn_apply_kernel(x_ref, scale_ref, shift_ref, o_ref):
    o_ref[...] = (x_ref[...].astype(jnp.float32) * scale_ref[...]
                  + shift_ref[...]).astype(o_ref.dtype)


# ---------------------------------------------------------------------------
# Wrapper
# ---------------------------------------------------------------------------
def batchnorm1d_forward(x, gamma, beta, *, eps=EPS, c_tile=512, n_tile=1024,
                        force_two_pass=False):
    """Training-mode BatchNorm1d forward.  x: (N, C); gamma, beta: (C,)."""
    n, c = x.shape
    itemsize = jnp.dtype(x.dtype).itemsize
    budget, vmem_limit = _vmem_budget_and_limit()
    c128 = _round_up(c, 128)

    # ---- fused single-pass path --------------------------------------------
    # Per-step footprint (conservative): 2x double-buffered input block +
    # 2x double-buffered output block + ~3 full-tile f32 intermediates.
    fused_bpe = 4 * itemsize + 3 * 4
    tc_budget_max = (budget // max(1, n * fused_bpe)) // 128 * 128
    use_fused = (not force_two_pass) and tc_budget_max >= 128

    if use_fused:
        tc = min(c128, tc_budget_max)
        # >=2 channel tiles when possible (v7x megacore, DMA/compute overlap);
        # never increases x traffic (each element still read exactly once).
        if c128 >= 256 and pl.cdiv(c128, tc) < 2:
            tc = min(tc, max(128, _round_up(pl.cdiv(c128, 2), 128)))
        num_ct = pl.cdiv(c, tc)
        cg = num_ct * tc
        gamma_p = jnp.pad(gamma.astype(jnp.float32), (0, cg - c)).reshape(1, cg)
        beta_p = jnp.pad(beta.astype(jnp.float32), (0, cg - c)).reshape(1, cg)

        return pl.pallas_call(
            functools.partial(_bn_fused_kernel, eps),
            out_shape=jax.ShapeDtypeStruct((n, c), x.dtype),
            grid_spec=pltpu.PrefetchScalarGridSpec(
                num_scalar_prefetch=0,
                grid=(num_ct,),
                in_specs=[
                    pl.BlockSpec((n, tc), lambda j: (0, j)),
                    pl.BlockSpec((1, tc), lambda j: (0, j)),
                    pl.BlockSpec((1, tc), lambda j: (0, j)),
                ],
                out_specs=pl.BlockSpec((n, tc), lambda j: (0, j)),
            ),
            compiler_params=pltpu.CompilerParams(
                dimension_semantics=("parallel",),
                vmem_limit_bytes=vmem_limit),
            cost_estimate=pl.CostEstimate(
                flops=7 * n * c,
                transcendentals=c,
                bytes_accessed=2 * n * c * itemsize + 3 * c * 4),
        )(x, gamma_p, beta_p)

    # ---- two-pass path (large batch) ----------------------------------------
    granule = _sublane_granule(x.dtype)
    nt = _round_up(max(1, min(n_tile, n)), granule)

    # Channel tile: lane-dense 128-multiple; >=2 tiles when C allows so both
    # v7x TensorCores get work on the ("parallel", "arbitrary") stats grid.
    tc = min(_round_up(c_tile, 128), c128)
    if c128 >= 256 and pl.cdiv(c128, tc) < 2:
        tc = min(tc, max(128, _round_up(pl.cdiv(c128, 2), 128)))
    num_ct = pl.cdiv(c, tc)
    cg = num_ct * tc

    # Keep per-step VMEM (buffers + temporaries) inside the budget.
    max_nt = max(granule, (budget // (5 * tc * 4)) // granule * granule)
    nt = min(nt, max_nt)
    num_nt = pl.cdiv(n, nt)

    gamma_p = jnp.pad(gamma.astype(jnp.float32), (0, cg - c)).reshape(1, cg)
    beta_p = jnp.pad(beta.astype(jnp.float32), (0, cg - c)).reshape(1, cg)

    scale, shift = pl.pallas_call(
        functools.partial(_bn_stats_kernel, n, nt, eps),
        out_shape=(jax.ShapeDtypeStruct((1, cg), jnp.float32),
                   jax.ShapeDtypeStruct((1, cg), jnp.float32)),
        grid_spec=pltpu.PrefetchScalarGridSpec(
            num_scalar_prefetch=0,
            grid=(num_ct, num_nt),
            in_specs=[
                pl.BlockSpec((nt, tc), lambda j, i: (i, j)),
                pl.BlockSpec((1, tc), lambda j, i: (0, j)),
                pl.BlockSpec((1, tc), lambda j, i: (0, j)),
            ],
            out_specs=[
                pl.BlockSpec((1, tc), lambda j, i: (0, j)),
                pl.BlockSpec((1, tc), lambda j, i: (0, j)),
            ],
            scratch_shapes=[pltpu.VMEM((1, tc), jnp.float32),
                            pltpu.VMEM((1, tc), jnp.float32)],
        ),
        compiler_params=pltpu.CompilerParams(
            dimension_semantics=("parallel", "arbitrary"),
            vmem_limit_bytes=vmem_limit),
        cost_estimate=pl.CostEstimate(
            flops=8 * n * c,
            transcendentals=c,
            bytes_accessed=n * c * itemsize + 4 * c * 4),
    )(x, gamma_p, beta_p)

    out = pl.pallas_call(
        _bn_apply_kernel,
        out_shape=jax.ShapeDtypeStruct((n, c), x.dtype),
        grid_spec=pltpu.PrefetchScalarGridSpec(
            num_scalar_prefetch=0,
            grid=(num_ct, num_nt),
            in_specs=[
                pl.BlockSpec((nt, tc), lambda j, i: (i, j)),
                pl.BlockSpec((1, tc), lambda j, i: (0, j)),
                pl.BlockSpec((1, tc), lambda j, i: (0, j)),
            ],
            out_specs=pl.BlockSpec((nt, tc), lambda j, i: (i, j)),
        ),
        compiler_params=pltpu.CompilerParams(
            dimension_semantics=("parallel", "parallel"),
            vmem_limit_bytes=vmem_limit),
        cost_estimate=pl.CostEstimate(
            flops=2 * n * c,
            transcendentals=0,
            bytes_accessed=2 * n * c * itemsize + 2 * c * 4),
    )(x, scale, shift)
    return out


# ---------------------------------------------------------------------------
# Pure-JAX reference (PyTorch training-mode BatchNorm1d forward).
# ---------------------------------------------------------------------------
def batchnorm1d_ref(x, gamma, beta, eps=EPS):
    mean = jnp.mean(x, axis=0, keepdims=True)
    var = jnp.mean((x - mean) ** 2, axis=0, keepdims=True)
    return (x - mean) / jnp.sqrt(var + eps) * gamma[None, :] + beta[None, :]


if __name__ == "__main__":
    key = jax.random.PRNGKey(0)
    kx, kg, kb, kx2 = jax.random.split(key, 4)

    # --- shape implied by the module's test: 2-D (batch, hidden) input ------
    batch = 8
    input_dim = 32

    x = jax.random.normal(kx, (batch, input_dim), dtype=jnp.float32)
    # PyTorch init is weight=1, bias=0; perturb so the affine path is exercised.
    gamma = jnp.ones((input_dim,), jnp.float32) + 0.1 * jax.random.normal(
        kg, (input_dim,), dtype=jnp.float32)
    beta = 0.1 * jax.random.normal(kb, (input_dim,), dtype=jnp.float32)

    out = jax.block_until_ready(batchnorm1d_forward(x, gamma, beta))
    ref = batchnorm1d_ref(x, gamma, beta)
    assert out.shape == (batch, input_dim)
    assert jnp.allclose(out, ref, atol=2e-5, rtol=1e-5)

    # --- also exercise the two-pass (N-reduction) path with ragged tiles ----
    n_big, c_big = 300, 200     # non-aligned on purpose (ragged N & C blocks)
    x_big = 2.0 * jax.random.normal(kx2, (n_big, c_big), dtype=jnp.float32) + 0.5
    gamma_big = jnp.linspace(0.5, 1.5, c_big, dtype=jnp.float32)
    beta_big = jnp.linspace(-0.2, 0.2, c_big, dtype=jnp.float32)

    out_big = jax.block_until_ready(
        batchnorm1d_forward(x_big, gamma_big, beta_big,
                            n_tile=128, force_two_pass=True))
    ref_big = batchnorm1d_ref(x_big, gamma_big, beta_big)
    assert out_big.shape == (n_big, c_big)
    assert jnp.allclose(out_big, ref_big, atol=1e-4, rtol=1e-4)

    print("KERNEL_OK")
</pallas_src>

<mosaic_0001>
module attributes {stable_mosaic.version = 11 : i64} {
  func.func @_bn_fused_kernel(%arg0: i32, %arg1: memref<8x128xf32, #tpu.memory_space<vmem>>, %arg2: memref<1x128xf32, #tpu.memory_space<vmem>>, %arg3: memref<1x128xf32, #tpu.memory_space<vmem>>, %arg4: memref<8x128xf32, #tpu.memory_space<vmem>>) attributes {dimension_semantics = [#tpu.dimension_semantics<parallel>], iteration_bounds = array<i64: 1>, scalar_prefetch = 0 : i64, scratch_operands = 0 : i64, tpu.core_type = #tpu.core_type<tc>, window_params = [{transform_indices = @transform_0, window_bounds = array<i64: 8, 128>}, {transform_indices = @transform_1, window_bounds = array<i64: 1, 128>}, {transform_indices = @transform_2, window_bounds = array<i64: 1, 128>}, {transform_indices = @transform_3, window_bounds = array<i64: 8, 128>}]} {
    %c0 = arith.constant 0 : index
    %c0_0 = arith.constant 0 : index
    %0 = vector.load %arg1[%c0, %c0_0] : memref<8x128xf32, #tpu.memory_space<vmem>>, vector<8x128xf32>
    %cst = arith.constant dense<0.000000e+00> : vector<128xf32>
    %1 = vector.multi_reduction <add>, %0, %cst [0] : vector<8x128xf32> to vector<128xf32>
    %2 = vector.shape_cast %1 : vector<128xf32> to vector<1x128xf32>
    %cst_1 = arith.constant 8.000000e+00 : f32
    %3 = vector.broadcast %cst_1 : f32 to vector<1x128xf32>
    %4 = arith.divf %2, %3 : vector<1x128xf32>
    %5 = vector.broadcast %4 : vector<1x128xf32> to vector<8x128xf32>
    %6 = arith.subf %0, %5 : vector<8x128xf32>
    %7 = arith.mulf %6, %6 : vector<8x128xf32>
    %cst_2 = arith.constant dense<0.000000e+00> : vector<128xf32>
    %8 = vector.multi_reduction <add>, %7, %cst_2 [0] : vector<8x128xf32> to vector<128xf32>
    %9 = vector.shape_cast %8 : vector<128xf32> to vector<1x128xf32>
    %cst_3 = arith.constant 8.000000e+00 : f32
    %10 = vector.broadcast %cst_3 : f32 to vector<1x128xf32>
    %11 = arith.divf %9, %10 : vector<1x128xf32>
    %cst_4 = arith.constant 9.99999974E-6 : f32
    %12 = vector.broadcast %cst_4 : f32 to vector<1x128xf32>
    %13 = arith.addf %11, %12 : vector<1x128xf32>
    %14 = math.rsqrt %13 : vector<1x128xf32>
    %c0_5 = arith.constant 0 : index
    %c0_6 = arith.constant 0 : index
    %15 = vector.load %arg2[%c0_5, %c0_6] : memref<1x128xf32, #tpu.memory_space<vmem>>, vector<1x128xf32>
    %16 = arith.mulf %15, %14 : vector<1x128xf32>
    %c0_7 = arith.constant 0 : index
    %c0_8 = arith.constant 0 : index
    %17 = vector.load %arg3[%c0_7, %c0_8] : memref<1x128xf32, #tpu.memory_space<vmem>>, vector<1x128xf32>
    %18 = arith.mulf %4, %16 : vector<1x128xf32>
    %19 = arith.subf %17, %18 : vector<1x128xf32>
    %20 = vector.broadcast %16 : vector<1x128xf32> to vector<8x128xf32>
    %21 = arith.mulf %0, %20 : vector<8x128xf32>
    %22 = vector.broadcast %19 : vector<1x128xf32> to vector<8x128xf32>
    %23 = arith.addf %21, %22 : vector<8x128xf32>
    %c0_9 = arith.constant 0 : index
    %c0_10 = arith.constant 0 : index
    %24 = vector.load %arg4[%c0_9, %c0_10] : memref<8x128xf32, #tpu.memory_space<vmem>>, vector<8x128xf32>
    tpu.vector_store %arg4[%c0_9, %c0_10], %23 {strides = array<i32>} : memref<8x128xf32, #tpu.memory_space<vmem>>, vector<8x128xf32>,
    return
  }
  func.func @transform_0(%arg0: i32) -> (i32, i32) {
    %c0_i32 = arith.constant 0 : i32
    %c0_i32_0 = arith.constant 0 : i32
    return %c0_i32, %arg0 : i32, i32
  }
  func.func @transform_1(%arg0: i32) -> (i32, i32) {
    %c0_i32 = arith.constant 0 : i32
    %c0_i32_0 = arith.constant 0 : i32
    return %c0_i32, %arg0 : i32, i32
  }
  func.func @transform_2(%arg0: i32) -> (i32, i32) {
    %c0_i32 = arith.constant 0 : i32
    %c0_i32_0 = arith.constant 0 : i32
    return %c0_i32, %arg0 : i32, i32
  }
  func.func @transform_3(%arg0: i32) -> (i32, i32) {
    %c0_i32 = arith.constant 0 : i32
    %c0_i32_0 = arith.constant 0 : i32
    return %c0_i32, %arg0 : i32, i32
  }
}

</mosaic_0001>

<llo_original>
// kernel: tpu_custom_call.1
$region0: #{tpu_custom_call.1}
  #allocation0 [shape = 'u32[]', space=smem, size = 0x4, offset = 0x4, fixed_abs, tag = 'smem constant byte address 0x4 - core index']
  #allocation1 [shape = 'u32[144,128]{1,0:T(1,128)}', space=vmem, size = 0x12000, scoped, tag = 'internal scratch']
  %s0 = inlined_call_operand.hbm [shape: f32[8,32], index: 0, kind: input, shape index: {}]
  %s1 = inlined_call_operand.vmem [shape: f32[1,128], index: 1, kind: input, shape index: {}]
  %s2 = inlined_call_operand.vmem [shape: f32[1,128], index: 2, kind: input, shape index: {}]
  %s3 = inlined_call_operand.hbm [shape: f32[8,32], index: 3, kind: output, shape index: {}]
  %s4 = sld [smem:[#allocation0]]
  $region26: #{tpu_custom_call.1} parent=0
    _
  %s6 = ssub.s32 1, %s4
  %s7 = scalar_select 0, %s6, %s4
  $region1: #{tpu_custom_call.1} parent=0
    #allocation2 [shape = 'u8[4096]{0}', space=vmem, size = 0x1000, scoped, tag = 'input window, operand 0, single buffered']
    #allocation3 [shape = 's32[1]{0}', space=sflag, size = 0x4, scoped, tag = 'scoped memory for tpu_custom_call.1']
    #allocation4 [shape = 's32[1]{0}', space=sflag, size = 0x4, scoped, tag = 'scoped memory for tpu_custom_call.1']
    #allocation5 [shape = 'u8[4096]{0}', space=vmem, size = 0x1000, scoped, tag = 'output window, operand 0, single buffered']
    %8 = vsyncpa [#allocation3], 0
    %9 = vsyncpa [#allocation4], 0
    // Predicated region
    $region2: #{tpu_custom_call.1} parent=1 // pred_check
      _
    $region3: #{tpu_custom_call.1} parent=1 // pred_check_branch
      %11 = sbr.rel (0) target = $region5
    $region4: #{tpu_custom_call.1} parent=1 // pred_region
      %s13 = ssub.s32 128, 128
      %14 = vsyncadd [#allocation3], %s13
      %s16 = sshll.u32 [#allocation2], 4
      %s17 = int_to_ptr.vmem [resolvable:$true] %s16
      %19 = dma.hbm_to_vmem [thread:$0]  %s0, 128, %s17, [#allocation3]
    $region5: #{tpu_custom_call.1} parent=1 // pred_fallthru
      _
    // Predicated region
    $region6: #{tpu_custom_call.1} parent=1 // pred_check
      _
    $region7: #{tpu_custom_call.1} parent=1 // pred_check_branch
      %21 = sbr.rel (0) target = $region9
    $region8: #{tpu_custom_call.1} parent=1 // pred_region
      _
    $region9: #{tpu_custom_call.1} parent=1 // pred_fallthru
      _
    // Predicated region
    $region10: #{tpu_custom_call.1} parent=1 // pred_check
      _
    $region11: #{tpu_custom_call.1} parent=1 // pred_check_branch
      %23 = sbr.rel (0) target = $region13
    $region12: #{tpu_custom_call.1} parent=1 // pred_region
      _
    $region13: #{tpu_custom_call.1} parent=1 // pred_fallthru
      _
    // Predicated region
    $region14: #{tpu_custom_call.1} parent=1 // pred_check
      _
    $region15: #{tpu_custom_call.1} parent=1 // pred_check_branch
      %25 = sbr.rel (0) target = $region17
    $region16: #{tpu_custom_call.1} parent=1 // pred_region
      %26 = dma.done [#allocation3], 128
    $region17: #{tpu_custom_call.1} parent=1 // pred_fallthru
      _
    %v27 = vld [vmem:[#allocation2] sm:$0xff]
    %v28 = vrot.slane %v27, 4
    %v29 = vadd.f32 %v27, %v28
    %v30 = vrot.slane %v29, 2
    %v31 = vadd.f32 %v29, %v30
    %v32 = vrot.slane %v31, 1
    %v33 = vadd.f32 %v31, %v32
    %v34 = vrcp.pop 8.0
    %v35 = vmul.f32 %v33, %v34
    %v36 = vsub.f32 %v27, %v35
    %v37 = vmul.f32 %v36, %v36
    %v38 = vrot.slane %v37, 4
    %v39 = vadd.f32 %v37, %v38
    %v40 = vrot.slane %v39, 2
    %v41 = vadd.f32 %v39, %v40
    %v42 = vrot.slane %v41, 1
    %v43 = vadd.f32 %v41, %v42
    %v44 = vmul.f32 %v43, %v34
    %v45 = vadd.f32 %v44, 1e-05
    %v46 = vrsqrt.pop %v45
    %v47 = vld [vmem:[%s1] sm:$0x1]
    %v48 = vmul.f32 %v47, %v46
    %v49 = vld [vmem:[%s2] sm:$0x1]
    %v50 = vmul.f32 %v35, %v48
    %v51 = vsub.f32 %v49, %v50
    %v53 = vlaneseq
    %v54 = vshrl.u32 %v53, 7
    %v55 = vsub.s32 0, %v54
    %v56 = vrot.slane %v48, %v55
    %v58 = vmul.f32 %v27, %v56
    %v60 = vlaneseq
    %v61 = vshrl.u32 %v60, 7
    %v62 = vsub.s32 0, %v61
    %v63 = vrot.slane %v51, %v62
    %v65 = vadd.f32 %v58, %v63
    %66 = vst [vmem:[#allocation5] sm:$0xff] %v65
    // Predicated region
    $region18: #{tpu_custom_call.1} parent=1 // pred_check
      _
    $region19: #{tpu_custom_call.1} parent=1 // pred_check_branch
      %68 = sbr.rel (0) target = $region21
    $region20: #{tpu_custom_call.1} parent=1 // pred_region
      %s70 = ssub.s32 128, 128
      %71 = vsyncadd [#allocation4], %s70
      %s73 = sshll.u32 [#allocation5], 4
      %s74 = int_to_ptr.vmem [resolvable:$true] %s73
      %76 = dma.vmem_to_hbm [thread:$0]  %s74, 128, %s3, [#allocation4]
    $region21: #{tpu_custom_call.1} parent=1 // pred_fallthru
      _
    // Predicated region
    $region22: #{tpu_custom_call.1} parent=1 // pred_check
      _
    $region23: #{tpu_custom_call.1} parent=1 // pred_check_branch
      %78 = sbr.rel (0) target = $region25
    $region24: #{tpu_custom_call.1} parent=1 // pred_region
      %79 = dma.done [#allocation4], 128
    $region25: #{tpu_custom_call.1} parent=1 // pred_fallthru
      _
    %80 = vsyncpa [#allocation3], 1
    %81 = vsyncpa [#allocation4], 1

</llo_original>
